<compile_context>
chip_gen: v6e
topology: v6e:2x2x1
jax: 0.10.0
libtpu: 0.0.40
codegen_flags: <defaults>
</compile_context>

<pallas_src>
import jax
import jax.numpy as jnp
from jax.experimental import pallas as pl
from jax.experimental.pallas import tpu as pltpu

_LANE = 128
_TILE_BYTES = 4 * 1024 * 1024          # target bytes per x tile (out tile matches)
_MAX_ROWS = 1024                       # sublane-dim cap
_MAX_LANES = 2048                      # lane-dim cap (multiple of 128)
_VMEM_LIMIT = 48 * 1024 * 1024         # explicit scoped-VMEM limit (safe on v5e/v6e/v7x)


def prelu_kernel(x_ref, a_ref, o_ref):
    # x_ref: (r_blk, t_blk); a_ref: (r_blk, 1) or (1, t_blk) f32; o_ref: (r_blk, t_blk)
    x = x_ref[...]
    a = a_ref[...]                                            # f32 slope, broadcasts
    ax = (a * x.astype(jnp.float32)).astype(o_ref.dtype)      # negative branch
    o_ref[...] = jnp.where(x > 0, x.astype(o_ref.dtype), ax)  # == max(x,0)+a*min(x,0)


def _sublane_unit(dtype):
    # Sub-32-bit dtypes pack along sublanes: 8 rows for f32, 16 for bf16, 32 for int8.
    bits = jnp.dtype(dtype).itemsize * 8
    return max(8, 256 // bits)


def _choose_tiles(rows, cols, itemsize, r_unit):
    # Lane (last) dim: full axis if it fits the cap, else a 128-aligned cap
    # with the ragged tail handled by a cdiv grid (never whole-axis fallback).
    if cols <= _MAX_LANES:
        t_blk = cols
    else:
        t_blk = (_MAX_LANES // _LANE) * _LANE
    # Sublane dim: as many rows as the byte budget allows, aligned to r_unit.
    budget_rows = max(r_unit, _TILE_BYTES // max(1, t_blk * itemsize))
    budget_rows = min(budget_rows, _MAX_ROWS)
    if rows <= budget_rows:
        r_blk = rows
    else:
        r_blk = max(r_unit, (budget_rows // r_unit) * r_unit)
    # Keep >= 2 grid steps when possible so v7x's two TensorCores both get work.
    if pl.cdiv(rows, r_blk) == 1 and pl.cdiv(cols, t_blk) == 1:
        if rows >= 2 * r_unit:
            r_blk = max(r_unit, (pl.cdiv(rows, 2) // r_unit) * r_unit)
        elif cols >= 2 * _LANE:
            t_blk = max(_LANE, (pl.cdiv(cols, 2) // _LANE) * _LANE)
    return r_blk, t_blk


@jax.jit
def prelu1d(x, a):
    """x: (B, C, T); a: per-channel slope of shape (1, C, 1) (or (C,))."""
    B, C, T = x.shape
    a_flat = jnp.reshape(a, (C,)).astype(jnp.float32)   # keep learned slope in f32
    itemsize = jnp.dtype(x.dtype).itemsize
    r_unit = _sublane_unit(x.dtype)

    if T % _LANE == 0:
        # Lane axis = T (128-aligned): rows = B*C, per-row slope column.
        rows, cols = B * C, T
        x2 = x.reshape(rows, cols)
        a2 = jnp.broadcast_to(a_flat[None, :], (B, C)).reshape(rows, 1)
        r_blk, t_blk = _choose_tiles(rows, cols, itemsize, r_unit)
        a_spec = pl.BlockSpec((r_blk, 1), lambda i, j: (i, 0))
    else:
        # Small / awkward T: lane axis = C*T (wider lanes, masking only at the
        # very tail of a row), rows = B, per-lane slope row.
        rows, cols = B, C * T
        x2 = x.reshape(rows, cols)
        a2 = jnp.broadcast_to(a_flat[:, None], (C, T)).reshape(1, cols)
        r_blk, t_blk = _choose_tiles(rows, cols, itemsize, r_unit)
        a_spec = pl.BlockSpec((1, t_blk), lambda i, j: (0, j))

    grid = (pl.cdiv(rows, r_blk), pl.cdiv(cols, t_blk))

    out2 = pl.pallas_call(
        prelu_kernel,
        out_shape=jax.ShapeDtypeStruct((rows, cols), x.dtype),
        grid=grid,
        in_specs=[
            pl.BlockSpec((r_blk, t_blk), lambda i, j: (i, j)),
            a_spec,
        ],
        out_specs=pl.BlockSpec((r_blk, t_blk), lambda i, j: (i, j)),
        compiler_params=pltpu.CompilerParams(
            dimension_semantics=("parallel", "parallel"),
            vmem_limit_bytes=_VMEM_LIMIT,
        ),
        cost_estimate=pl.CostEstimate(
            flops=3 * x.size,
            transcendentals=0,
            bytes_accessed=2 * x.size * itemsize + a2.size * 4,
        ),
    )(x2, a2)
    return out2.reshape(B, C, T)


def _reference(x, a):
    """Pure-JAX transcription of the PyTorch forward."""
    return jnp.maximum(x, 0.0) + a * jnp.minimum(x, 0.0)


if __name__ == "__main__":
    key = jax.random.PRNGKey(0)
    k_x, k_a = jax.random.split(key)

    # Module-consistent small shapes: (batch, num_features, seq_len)
    B, C, T = 2, 4, 16
    x = jax.random.normal(k_x, (B, C, T), dtype=jnp.float32)

    # Module init: a = 0.25 * ones(1, C, 1)
    a_init = 0.25 * jnp.ones((1, C, 1), dtype=jnp.float32)
    out = jax.block_until_ready(prelu1d(x, a_init))
    ref = _reference(x, a_init)
    assert out.shape == (B, C, T)
    assert jnp.allclose(out, ref, atol=1e-6, rtol=1e-6), "mismatch (init a)"

    # Channel-varying slopes exercise the per-channel broadcast path.
    a_rand = jax.random.uniform(k_a, (1, C, 1), dtype=jnp.float32)
    out2 = jax.block_until_ready(prelu1d(x, a_rand))
    ref2 = _reference(x, a_rand)
    assert jnp.allclose(out2, ref2, atol=1e-6, rtol=1e-6), "mismatch (rand a)"

    # Also exercise the lane-dense (T % 128 == 0) layout and the grid split.
    B2, C2, T2 = 2, 4, 256
    x_big = jax.random.normal(k_x, (B2, C2, T2), dtype=jnp.float32)
    a_big = jax.random.uniform(k_a, (1, C2, 1), dtype=jnp.float32)
    out3 = jax.block_until_ready(prelu1d(x_big, a_big))
    assert jnp.allclose(out3, _reference(x_big, a_big), atol=1e-6, rtol=1e-6), \
        "mismatch (lane-dense path)"

    print("KERNEL_OK")
</pallas_src>

<mosaic_0001>
module attributes {stable_mosaic.version = 11 : i64} {
  func.func @prelu_kernel(%arg0: i32, %arg1: i32, %arg2: memref<2x64xf32, #tpu.memory_space<vmem>>, %arg3: memref<1x64xf32, #tpu.memory_space<vmem>>, %arg4: memref<2x64xf32, #tpu.memory_space<vmem>>) attributes {dimension_semantics = [#tpu.dimension_semantics<parallel>, #tpu.dimension_semantics<parallel>], iteration_bounds = array<i64: 1, 1>, scalar_prefetch = 0 : i64, scratch_operands = 0 : i64, tpu.core_type = #tpu.core_type<tc>, window_params = [{transform_indices = @transform_0, window_bounds = array<i64: 2, 64>}, {transform_indices = @transform_1, window_bounds = array<i64: 1, 64>}, {transform_indices = @transform_2, window_bounds = array<i64: 2, 64>}]} {
    %c0 = arith.constant 0 : index
    %c0_0 = arith.constant 0 : index
    %0 = vector.load %arg2[%c0, %c0_0] : memref<2x64xf32, #tpu.memory_space<vmem>>, vector<2x64xf32>
    %c0_1 = arith.constant 0 : index
    %c0_2 = arith.constant 0 : index
    %1 = vector.load %arg3[%c0_1, %c0_2] : memref<1x64xf32, #tpu.memory_space<vmem>>, vector<1x64xf32>
    %2 = vector.broadcast %1 : vector<1x64xf32> to vector<2x64xf32>
    %3 = arith.mulf %2, %0 : vector<2x64xf32>
    %cst = arith.constant 0.000000e+00 : f32
    %4 = vector.broadcast %cst : f32 to vector<2x64xf32>
    %5 = arith.cmpf ogt, %0, %4 : vector<2x64xf32>
    %6 = arith.select %5, %0, %3 : vector<2x64xi1>, vector<2x64xf32>
    %c0_3 = arith.constant 0 : index
    %c0_4 = arith.constant 0 : index
    %7 = vector.load %arg4[%c0_3, %c0_4] : memref<2x64xf32, #tpu.memory_space<vmem>>, vector<2x64xf32>
    tpu.vector_store %arg4[%c0_3, %c0_4], %6 {strides = array<i32>} : memref<2x64xf32, #tpu.memory_space<vmem>>, vector<2x64xf32>,
    return
  }
  func.func @transform_0(%arg0: i32, %arg1: i32) -> (i32, i32) {
    %c0_i32 = arith.constant 0 : i32
    return %arg0, %arg1 : i32, i32
  }
  func.func @transform_1(%arg0: i32, %arg1: i32) -> (i32, i32) {
    %c0_i32 = arith.constant 0 : i32
    %c0_i32_0 = arith.constant 0 : i32
    return %c0_i32, %arg1 : i32, i32
  }
  func.func @transform_2(%arg0: i32, %arg1: i32) -> (i32, i32) {
    %c0_i32 = arith.constant 0 : i32
    return %arg0, %arg1 : i32, i32
  }
}

</mosaic_0001>

<llo_original>
// kernel: prelu1d.1
$region0: #{prelu1d.1}
  #allocation0 [shape = 'u32[]', space=smem, size = 0x4, offset = 0x4, fixed_abs, tag = 'smem constant byte address 0x4 - core index']
  #allocation1 [shape = 'u32[144,128]{1,0:T(1,128)}', space=vmem, size = 0x12000, scoped, tag = 'internal scratch']
  %s0 = inlined_call_operand.vmem [shape: f32[2,64], index: 0, kind: input, shape index: {}]
  %s1 = inlined_call_operand.vmem [shape: f32[1,64], index: 1, kind: input, shape index: {}]
  %s2 = inlined_call_operand.vmem [shape: f32[2,64], index: 2, kind: output, shape index: {}]
  %s3 = sld [smem:[#allocation0]]
  $region18: #{prelu1d.1} parent=0
    _
  %s5 = ssub.s32 1, %s3
  %s6 = scalar_select 0, %s5, %s3
  // Predicated region
  $region2: #{prelu1d.1} parent=0 // pred_check
    _
  $region3: #{prelu1d.1} parent=0 // pred_check_branch
    %8 = sbr.rel (0) target = $region5
  $region4: #{prelu1d.1} parent=0 // pred_region
    _
  $region5: #{prelu1d.1} parent=0 // pred_fallthru
    _
  // Predicated region
  $region6: #{prelu1d.1} parent=0 // pred_check
    _
  $region7: #{prelu1d.1} parent=0 // pred_check_branch
    %10 = sbr.rel (0) target = $region9
  $region8: #{prelu1d.1} parent=0 // pred_region
    _
  $region9: #{prelu1d.1} parent=0 // pred_fallthru
    _
  %v11 = vld [vmem:[%s0] sm:$0x3]
  %v12 = vld [vmem:[%s1] sm:$0x1]
  %v14 = vlaneseq
  %v15 = vshrl.u32 %v14, 7
  %v16 = vsub.s32 0, %v15
  %v17 = vrot.slane %v12, %v16
  %v19 = vmul.f32 %v17, %v11
  %vm20 = vcmp.gt.f32.partialorder %v11, 0.0
  %v21 = vsel %vm20, %v11, %v19
  %vm22 = vcmask 517120
  %23 = vst.msk [vmem:[%s2] sm:$0x3] %vm22, %v21
  // Predicated region
  $region10: #{prelu1d.1} parent=0 // pred_check
    _
  $region11: #{prelu1d.1} parent=0 // pred_check_branch
    %25 = sbr.rel (0) target = $region13
  $region12: #{prelu1d.1} parent=0 // pred_region
    _
  $region13: #{prelu1d.1} parent=0 // pred_fallthru
    _
  // Predicated region
  $region14: #{prelu1d.1} parent=0 // pred_check
    _
  $region15: #{prelu1d.1} parent=0 // pred_check_branch
    %27 = sbr.rel (0) target = $region17
  $region16: #{prelu1d.1} parent=0 // pred_region
    _
  $region17: #{prelu1d.1} parent=0 // pred_fallthru
    _

</llo_original>
